<compile_context>
chip_gen: v5e
topology: v5e:2x2
jax: 0.10.0
libtpu: 0.0.40
codegen_flags: <defaults>
</compile_context>

<pallas_src>
import functools
import math

import jax
import jax.numpy as jnp
from jax.experimental import pallas as pl
from jax.experimental.pallas import tpu as pltpu


def _layernorm_kernel(x_ref, w_ref, b_ref, o_ref, *, eps, true_hidden):
    x = x_ref[...].astype(jnp.float32)            # (tile_rows, hidden_pad)
    w = w_ref[...]                                # (1, hidden_pad), already f32
    b = b_ref[...]                                # (1, hidden_pad), already f32

    hidden_pad = x.shape[-1]
    inv_n = jnp.float32(1.0 / true_hidden)

    # Two-pass (subtract-mean) variance for numerical robustness; padded input
    # columns are zero so they do not perturb the sum.
    u = jnp.sum(x, axis=-1, keepdims=True) * inv_n
    xc = x - u
    if true_hidden != hidden_pad:
        # Zero out pad lanes so they don't contribute to the variance; their
        # outputs are sliced off in the wrapper anyway.
        lane = jax.lax.broadcasted_iota(jnp.int32, (1, hidden_pad), 1)
        xc = jnp.where(lane < true_hidden, xc, 0.0)
    s = jnp.sum(xc * xc, axis=-1, keepdims=True) * inv_n
    y = xc * jax.lax.rsqrt(s + eps)               # EUP rsqrt (≡ divide by sqrt)
    o_ref[...] = (w * y + b).astype(o_ref.dtype)


def _vmem_budgets():
    """(block budget bytes, vmem_limit_bytes) sized per TPU generation."""
    try:
        cap = pltpu.get_tpu_info().vmem_capacity_bytes
    except Exception:  # pragma: no cover - conservative fallback
        cap = 128 << 20
    if cap <= (64 << 20):            # v7x: 64 MiB physical per TensorCore
        return 12 << 20, 40 << 20
    return 28 << 20, 96 << 20        # v5e / v6e: 128 MiB physical


_TARGET_STEPS = 8  # keep >= ~8 grid steps so DMA pipelining actually engages


def _auto_tile_rows(rows, hidden_pad, in_dtype, out_dtype, budget_bytes,
                    max_tile=1024):
    """Row tile: multiple of the dtype packing, fits the VMEM budget (counting
    the f32 intermediates), keeps >= _TARGET_STEPS grid steps when possible,
    and prefers an even grid length (v7x dual-TC sharding)."""
    in_bytes = jnp.dtype(in_dtype).itemsize
    out_bytes = jnp.dtype(out_dtype).itemsize
    pack = max(8, 32 // max(1, in_bytes))         # 8 (f32), 16 (bf16), 32 (i8)

    # Double-buffered in/out blocks + ~3 f32 intermediates (x upcast, xc, y).
    per_row = hidden_pad * (2 * (in_bytes + out_bytes) + 3 * 4)
    t_budget = max(pack, min(max_tile, (budget_bytes // per_row) // pack * pack))

    rows_up = -(-rows // pack) * pack
    # Pipelining cap: tile small enough that the grid has >= _TARGET_STEPS
    # steps; falls back to `pack` when there are too few rows to split further.
    t_pipe = max(pack, (rows_up // _TARGET_STEPS) // pack * pack)

    t = max(pack, min(t_budget, t_pipe, rows_up))

    # v7x megacore: prefer an even grid length so both TensorCores get work.
    while t > pack and (-(-rows // t)) % 2 == 1:
        t -= pack
    return t


def layernorm(x, weight, bias, eps=1e-12, tile_rows=None):
    """x: (..., hidden); weight/bias: (hidden,). Returns same shape/dtype as x.
    Note: this module's default eps is 1e-12 (torch.nn.LayerNorm default is
    1e-5) — pass the model's actual eps."""
    orig_shape = x.shape
    hidden = orig_shape[-1]
    rows = math.prod(orig_shape[:-1])
    x2 = x.reshape(rows, hidden)

    # Lane-dense stores: pad hidden up to a multiple of 128 if needed.
    hidden_pad = -(-hidden // 128) * 128
    w1 = weight.astype(jnp.float32)
    b1 = bias.astype(jnp.float32)
    if hidden_pad != hidden:
        pad = hidden_pad - hidden
        x2 = jnp.pad(x2, ((0, 0), (0, pad)))
        w1 = jnp.pad(w1, (0, pad))
        b1 = jnp.pad(b1, (0, pad))
    w2 = w1.reshape(1, hidden_pad)
    b2 = b1.reshape(1, hidden_pad)

    budget_bytes, vmem_limit = _vmem_budgets()
    if tile_rows is None:
        tile_rows = _auto_tile_rows(rows, hidden_pad, x.dtype, x.dtype,
                                    budget_bytes)

    grid = (pl.cdiv(rows, tile_rows),)            # partial last block is fine
    kernel = functools.partial(_layernorm_kernel, eps=float(eps),
                               true_hidden=hidden)

    out = pl.pallas_call(
        kernel,
        out_shape=jax.ShapeDtypeStruct((rows, hidden_pad), x.dtype),
        grid=grid,
        in_specs=[
            pl.BlockSpec((tile_rows, hidden_pad), lambda i: (i, 0)),
            pl.BlockSpec((1, hidden_pad), lambda i: (0, 0)),
            pl.BlockSpec((1, hidden_pad), lambda i: (0, 0)),
        ],
        out_specs=pl.BlockSpec((tile_rows, hidden_pad), lambda i: (i, 0)),
        compiler_params=pltpu.CompilerParams(
            dimension_semantics=("parallel",),
            vmem_limit_bytes=int(vmem_limit),
        ),
    )(x2, w2, b2)

    if hidden_pad != hidden:
        out = out[:, :hidden]
    return out.reshape(orig_shape)


if __name__ == "__main__":
    key = jax.random.PRNGKey(0)
    k0, k1, k2 = jax.random.split(key, 3)

    def ref_layernorm(x, w, b, eps):
        u = jnp.mean(x, axis=-1, keepdims=True)
        s = jnp.mean((x - u) ** 2, axis=-1, keepdims=True)
        return w * ((x - u) / jnp.sqrt(s + eps)) + b

    # 1) GPT-2-small-shaped case: hidden=768 (lane-dense), 16 rows -> even grid.
    batch, seq, hidden = 2, 8, 768
    x = jax.random.normal(k0, (batch, seq, hidden), dtype=jnp.float32)
    weight = jnp.ones((hidden,), dtype=jnp.float32)   # module __init__ values
    bias = jnp.zeros((hidden,), dtype=jnp.float32)
    y = jax.block_until_ready(layernorm(x, weight, bias, eps=1e-12))
    assert jnp.allclose(y, ref_layernorm(x, weight, bias, 1e-12),
                        atol=1e-5, rtol=1e-5), "case 1 mismatch"

    # 2) Partial last row-tile (rows % tile_rows != 0) with non-trivial params.
    x2 = jax.random.normal(k1, (3, 5, hidden), dtype=jnp.float32)   # 15 rows
    w2 = jax.random.normal(k2, (hidden,), dtype=jnp.float32)
    b2 = jnp.linspace(-1.0, 1.0, hidden, dtype=jnp.float32)
    y2 = jax.block_until_ready(layernorm(x2, w2, b2, eps=1e-5, tile_rows=8))
    assert jnp.allclose(y2, ref_layernorm(x2, w2, b2, 1e-5),
                        atol=1e-4, rtol=1e-4), "case 2 mismatch"

    # 3) Non-multiple-of-128 hidden exercises the pad + in-kernel mask path.
    hidden3 = 100
    x3 = jax.random.normal(k1, (4, 6, hidden3), dtype=jnp.float32)
    w3 = jnp.ones((hidden3,), dtype=jnp.float32)
    b3 = jnp.zeros((hidden3,), dtype=jnp.float32)
    y3 = jax.block_until_ready(layernorm(x3, w3, b3, eps=1e-12))
    assert jnp.allclose(y3, ref_layernorm(x3, w3, b3, 1e-12),
                        atol=1e-5, rtol=1e-5), "case 3 mismatch"

    print("KERNEL_OK")
</pallas_src>

<mosaic_0001>
module attributes {stable_mosaic.version = 11 : i64} {
  func.func @_layernorm_kernel(%arg0: i32, %arg1: memref<8x768xf32, #tpu.memory_space<vmem>>, %arg2: memref<1x768xf32, #tpu.memory_space<vmem>>, %arg3: memref<1x768xf32, #tpu.memory_space<vmem>>, %arg4: memref<8x768xf32, #tpu.memory_space<vmem>>) attributes {dimension_semantics = [#tpu.dimension_semantics<parallel>], iteration_bounds = array<i64: 2>, scalar_prefetch = 0 : i64, scratch_operands = 0 : i64, tpu.core_type = #tpu.core_type<tc>, window_params = [{transform_indices = @transform_0, window_bounds = array<i64: 8, 768>}, {pipeline_mode = #tpu.pipeline_mode<synchronous>, transform_indices = @transform_1, window_bounds = array<i64: 1, 768>}, {pipeline_mode = #tpu.pipeline_mode<synchronous>, transform_indices = @transform_2, window_bounds = array<i64: 1, 768>}, {transform_indices = @transform_3, window_bounds = array<i64: 8, 768>}]} {
    %c0 = arith.constant 0 : index
    %c0_0 = arith.constant 0 : index
    %0 = vector.load %arg1[%c0, %c0_0] : memref<8x768xf32, #tpu.memory_space<vmem>>, vector<8x768xf32>
    %c0_1 = arith.constant 0 : index
    %c0_2 = arith.constant 0 : index
    %1 = vector.load %arg2[%c0_1, %c0_2] : memref<1x768xf32, #tpu.memory_space<vmem>>, vector<1x768xf32>
    %c0_3 = arith.constant 0 : index
    %c0_4 = arith.constant 0 : index
    %2 = vector.load %arg3[%c0_3, %c0_4] : memref<1x768xf32, #tpu.memory_space<vmem>>, vector<1x768xf32>
    %cst = arith.constant dense<0.000000e+00> : vector<8xf32>
    %3 = vector.multi_reduction <add>, %0, %cst [1] : vector<8x768xf32> to vector<8xf32>
    %4 = vector.shape_cast %3 : vector<8xf32> to vector<8x1xf32>
    %cst_5 = arith.constant 0.00130208337 : f32
    %5 = vector.broadcast %cst_5 : f32 to vector<8x1xf32>
    %6 = arith.mulf %4, %5 : vector<8x1xf32>
    %7 = vector.broadcast %6 : vector<8x1xf32> to vector<8x768xf32>
    %8 = arith.subf %0, %7 : vector<8x768xf32>
    %9 = arith.mulf %8, %8 : vector<8x768xf32>
    %cst_6 = arith.constant dense<0.000000e+00> : vector<8xf32>
    %10 = vector.multi_reduction <add>, %9, %cst_6 [1] : vector<8x768xf32> to vector<8xf32>
    %11 = vector.shape_cast %10 : vector<8xf32> to vector<8x1xf32>
    %cst_7 = arith.constant 0.00130208337 : f32
    %12 = vector.broadcast %cst_7 : f32 to vector<8x1xf32>
    %13 = arith.mulf %11, %12 : vector<8x1xf32>
    %cst_8 = arith.constant 9.99999996E-13 : f32
    %14 = vector.broadcast %cst_8 : f32 to vector<8x1xf32>
    %15 = arith.addf %13, %14 : vector<8x1xf32>
    %16 = math.rsqrt %15 : vector<8x1xf32>
    %17 = vector.broadcast %16 : vector<8x1xf32> to vector<8x768xf32>
    %18 = arith.mulf %8, %17 : vector<8x768xf32>
    %19 = vector.broadcast %1 : vector<1x768xf32> to vector<8x768xf32>
    %20 = arith.mulf %19, %18 : vector<8x768xf32>
    %21 = vector.broadcast %2 : vector<1x768xf32> to vector<8x768xf32>
    %22 = arith.addf %20, %21 : vector<8x768xf32>
    %c0_9 = arith.constant 0 : index
    %c0_10 = arith.constant 0 : index
    %23 = vector.load %arg4[%c0_9, %c0_10] : memref<8x768xf32, #tpu.memory_space<vmem>>, vector<8x768xf32>
    tpu.vector_store %arg4[%c0_9, %c0_10], %22 {strides = array<i32>} : memref<8x768xf32, #tpu.memory_space<vmem>>, vector<8x768xf32>,
    return
  }
  func.func @transform_0(%arg0: i32) -> (i32, i32) {
    %c0_i32 = arith.constant 0 : i32
    %c0_i32_0 = arith.constant 0 : i32
    return %arg0, %c0_i32 : i32, i32
  }
  func.func @transform_1(%arg0: i32) -> (i32, i32) {
    %c0_i32 = arith.constant 0 : i32
    %c0_i32_0 = arith.constant 0 : i32
    %c0_i32_1 = arith.constant 0 : i32
    return %c0_i32, %c0_i32_0 : i32, i32
  }
  func.func @transform_2(%arg0: i32) -> (i32, i32) {
    %c0_i32 = arith.constant 0 : i32
    %c0_i32_0 = arith.constant 0 : i32
    %c0_i32_1 = arith.constant 0 : i32
    return %c0_i32, %c0_i32_0 : i32, i32
  }
  func.func @transform_3(%arg0: i32) -> (i32, i32) {
    %c0_i32 = arith.constant 0 : i32
    %c0_i32_0 = arith.constant 0 : i32
    return %arg0, %c0_i32 : i32, i32
  }
}

</mosaic_0001>

<llo_original>
// kernel: tpu_custom_call.1
$region0: #{tpu_custom_call.1}
  #allocation0 [shape = 'u32[]', space=smem, size = 0x4, offset = 0x4, fixed_abs, tag = 'smem constant byte address 0x4 - core index']
  #allocation1 [shape = 'u32[72,128]{1,0:T(1,128)}', space=vmem, size = 0x9000, scoped, tag = 'internal scratch']
  %s0 = inlined_call_operand.hbm [shape: f32[16,768], index: 0, kind: input, shape index: {}]
  %s1 = inlined_call_operand.hbm [shape: f32[1,768], index: 1, kind: input, shape index: {}]
  %s2 = inlined_call_operand.hbm [shape: f32[1,768], index: 2, kind: input, shape index: {}]
  %s3 = inlined_call_operand.hbm [shape: f32[16,768], index: 3, kind: output, shape index: {}]
  %s4 = sld [smem:[#allocation0]]
  $region57: #{tpu_custom_call.1} parent=0
    _
  %s6 = ssub.s32 1, %s4
  %s7 = scalar_select 0, %s6, %s4
  $region1: #{tpu_custom_call.1} parent=0
    #allocation2 [shape = 'u8[49152]{0}', space=vmem, size = 0xc000, scoped, tag = 'input window, operand 0']
    #allocation3 [shape = 's32[2]{0}', space=sflag, size = 0x8, scoped, tag = 'scoped memory for tpu_custom_call.1']
    #allocation4 [shape = 's32[2]{0}', space=sflag, size = 0x8, scoped, tag = 'scoped memory for tpu_custom_call.1']
    #allocation5 [shape = 'u8[3072]{0}', space=vmem, size = 0xc00, scoped, tag = 'input window, operand 1, single buffered']
    #allocation6 [shape = 's32[1]{0}', space=sflag, size = 0x4, scoped, tag = 'scoped memory for tpu_custom_call.1']
    #allocation7 [shape = 'u8[3072]{0}', space=vmem, size = 0xc00, scoped, tag = 'input window, operand 2, single buffered']
    #allocation8 [shape = 'u8[49152]{0}', space=vmem, size = 0xc000, scoped, tag = 'output window, operand 0']
    %8 = vsyncpa [#allocation3], 0
    %s9 = scalar_lea.sflag [#allocation3], 1
    %10 = vsyncpa %s9, 0
    %11 = vsyncpa [#allocation6], 0
    %12 = vsyncpa [#allocation4], 0
    %s13 = scalar_lea.sflag [#allocation4], 1
    %14 = vsyncpa %s13, 0
    loop: start=0, step=1, limit=4
    $region2: #{tpu_custom_call.1} parent=1 // loop_pre_header
      _
    $region3: #{tpu_custom_call.1} parent=1 // loop_header
      %s16 = sphi 0, %s20
      %p17 = scmp.ge.s32.totalorder %s16, 4
      %s26 = sphi 0, %s28
      %s29 = sphi 0, %s26
      %s30 = sphi 0, %s29
      %s46 = sphi 0, %s30
      %s50 = sphi 0, %s50
      %s52 = sphi 0, %s50
      %s53 = sphi 0, %s52
      %s67 = sphi 0, %s53
      %s71 = sphi 0, %s71
      %s73 = sphi 0, %s71
      %s74 = sphi 0, %s73
      %s88 = sphi 0, %s74
      %s94 = sphi 0, %s96
      %s97 = sphi 0, %s94
      %s98 = sphi 0, %s97
      %s114 = sphi 0, %s98
    $region4: #{tpu_custom_call.1} parent=1 // loop_header_branch
      %19 = sbr.rel (%p17) target = $region8
    $region5: #{tpu_custom_call.1} parent=1 // loop_body
      %s21 = ssub.s32 %s16, 1
      %s22 = ssub.s32 %s16, 2
      %s23 = sadd.s32 %s16, 1
      %s24 = ssub.s32 %s16, %s23
      %p25 = scmp.eq.s32.totalorder %s24, 0
      %s27 = sadd.s32 %s26, 1
      %s28 = scalar_select %p25, %s26, %s27
      %p31 = pneg %p25
      %p32 = scmp.eq.s32.totalorder %s16, 1
      %p33 = por %p31, %p32
      %p34 = scmp.ne.s32.totalorder %s26, %s29
      %p35 = scmp.eq.s32.totalorder %s16, 0
      %p36 = por %p34, %p35
      %p37 = scmp.ne.s32.totalorder %s26, %s29
      %p38 = scmp.eq.s32.totalorder %s21, 1
      %p39 = por %p37, %p38
      %p40 = scmp.ne.s32.totalorder %s29, %s30
      %p41 = scmp.eq.s32.totalorder %s21, 0
      %p42 = por %p40, %p41
      %p43 = scmp.ne.s32.totalorder %s29, %s30
      %p44 = scmp.eq.s32.totalorder %s22, 1
      %p45 = por %p43, %p44
      %p47 = scmp.ne.s32.totalorder %s30, %s46
      %p48 = scmp.eq.s32.totalorder %s22, 0
      %p49 = por %p47, %p48
      %s51 = sadd.s32 %s50, 1
      %p54 = scmp.eq.s32.totalorder %s16, 1
      %p55 = scmp.ne.s32.totalorder %s50, %s52
      %p56 = scmp.eq.s32.totalorder %s16, 0
      %p57 = por %p55, %p56
      %p58 = scmp.ne.s32.totalorder %s50, %s52
      %p59 = scmp.eq.s32.totalorder %s21, 1
      %p60 = por %p58, %p59
      %p61 = scmp.ne.s32.totalorder %s52, %s53
      %p62 = scmp.eq.s32.totalorder %s21, 0
      %p63 = por %p61, %p62
      %p64 = scmp.ne.s32.totalorder %s52, %s53
      %p65 = scmp.eq.s32.totalorder %s22, 1
      %p66 = por %p64, %p65
      %p68 = scmp.ne.s32.totalorder %s53, %s67
      %p69 = scmp.eq.s32.totalorder %s22, 0
      %p70 = por %p68, %p69
      %s72 = sadd.s32 %s71, 1
      %p75 = scmp.eq.s32.totalorder %s16, 1
      %p76 = scmp.ne.s32.totalorder %s71, %s73
      %p77 = scmp.eq.s32.totalorder %s16, 0
      %p78 = por %p76, %p77
      %p79 = scmp.ne.s32.totalorder %s71, %s73
      %p80 = scmp.eq.s32.totalorder %s21, 1
      %p81 = por %p79, %p80
      %p82 = scmp.ne.s32.totalorder %s73, %s74
      %p83 = scmp.eq.s32.totalorder %s21, 0
      %p84 = por %p82, %p83
      %p85 = scmp.ne.s32.totalorder %s73, %s74
      %p86 = scmp.eq.s32.totalorder %s22, 1
      %p87 = por %p85, %p86
      %p89 = scmp.ne.s32.totalorder %s74, %s88
      %p90 = scmp.eq.s32.totalorder %s22, 0
      %p91 = por %p89, %p90
      %s92 = ssub.s32 %s16, %s23
      %p93 = scmp.eq.s32.totalorder %s92, 0
      %s95 = sadd.s32 %s94, 1
      %s96 = scalar_select %p93, %s94, %s95
      %p99 = pneg %p93
      %p100 = scmp.eq.s32.totalorder %s16, 1
      %p101 = por %p99, %p100
      %p102 = scmp.ne.s32.totalorder %s94, %s97
      %p103 = scmp.eq.s32.totalorder %s16, 0
      %p104 = por %p102, %p103
      %p105 = scmp.ne.s32.totalorder %s94, %s97
      %p106 = scmp.eq.s32.totalorder %s21, 1
      %p107 = por %p105, %p106
      %p108 = scmp.ne.s32.totalorder %s97, %s98
      %p109 = scmp.eq.s32.totalorder %s21, 0
      %p110 = por %p108, %p109
      %p111 = scmp.ne.s32.totalorder %s97, %s98
      %p112 = scmp.eq.s32.totalorder %s22, 1
      %p113 = por %p111, %p112
      %p115 = scmp.ne.s32.totalorder %s98, %s114
      %p116 = scmp.eq.s32.totalorder %s22, 0
      %p117 = por %p115, %p116
      %p118 = scmp.le.s32.totalorder 1, %s16
      %p119 = scmp.lt.s32.totalorder %s16, 3
      %p120 = pnand %p118, %p119
      %p121 = pneg %p120
      // Predicated region
      $region9: #{tpu_custom_call.1} parent=5 // pred_check
        _
      $region10: #{tpu_custom_call.1} parent=5 // pred_check_branch
        %123 = sbr.rel (%p120) target = $region12
      $region11: #{tpu_custom_call.1} parent=5 // pred_region
        %s124 = ssub.s32 %s16, 1
        // Predicated region
        $region13: #{tpu_custom_call.1} parent=11 // pred_check
          %p125 = pneg %p63
        $region14: #{tpu_custom_call.1} parent=11 // pred_check_branch
          %127 = sbr.rel (%p125) target = $region16
        $region15: #{tpu_custom_call.1} parent=11 // pred_region
          %129 = vsyncadd [#allocation6], 0
          %s131 = sshll.u32 %s1, 4
          %s132 = int_to_ptr.hbm [resolvable:$true] %s131
          %s133 = sshll.u32 [#allocation5], 4
          %s134 = int_to_ptr.vmem [resolvable:$true] %s133
          %136 = dma.hbm_to_vmem [thread:$0]  %s132, 96, %s134, [#allocation6]
        $region16: #{tpu_custom_call.1} parent=11 // pred_fallthru
          _
        // Predicated region
        $region17: #{tpu_custom_call.1} parent=11 // pred_check
          %p137 = pneg %p84
        $region18: #{tpu_custom_call.1} parent=11 // pred_check_branch
          %139 = sbr.rel (%p137) target = $region20
        $region19: #{tpu_custom_call.1} parent=11 // pred_region
          %141 = vsyncadd [#allocation6], 0
          %s143 = sshll.u32 %s2, 4
          %s144 = int_to_ptr.hbm [resolvable:$true] %s143
          %s145 = sshll.u32 [#allocation7], 4
          %s146 = int_to_ptr.vmem [resolvable:$true] %s145
          %148 = dma.hbm_to_vmem [thread:$0]  %s144, 96, %s146, [#allocation6]
        $region20: #{tpu_custom_call.1} parent=11 // pred_fallthru
          _
      $region12: #{tpu_custom_call.1} parent=5 // pred_fallthru
        _
      %p149 = scmp.lt.s32.totalorder %s16, 2
      // Predicated region
      $region21: #{tpu_custom_call.1} parent=5 // pred_check
        %p150 = pneg %p149
      $region22: #{tpu_custom_call.1} parent=5 // pred_check_branch
        %152 = sbr.rel (%p150) target = $region24
      $region23: #{tpu_custom_call.1} parent=5 // pred_region
        // Predicated region
        $region25: #{tpu_custom_call.1} parent=23 // pred_check
          %p153 = pneg %p36
        $region26: #{tpu_custom_call.1} parent=23 // pred_check_branch
          %155 = sbr.rel (%p153) target = $region28
        $region27: #{tpu_custom_call.1} parent=23 // pred_region
          %s156 = sand.u32 %s26, 1
          %s157 = scalar_lea.sflag [#allocation3], %s156
          %s158 = sand.u32 %s26, 1
          %s159 = smul.addr %s158, 48
          %s160 = scalar_lea.vmem [#allocation2], %s159
          %162 = vsyncadd %s157, 0
          %s163 = smul.addr %s16, 6
          %s164 = smul.addr %s163, 8
          %s165 = scalar_lea.hbm %s0, %s164
          %s167 = sshll.u32 %s165, 4
          %s168 = int_to_ptr.hbm [resolvable:$true] %s167
          %s169 = sshll.u32 %s160, 4
          %s170 = int_to_ptr.vmem [resolvable:$true] %s169
          %172 = dma.hbm_to_vmem [thread:$0]  %s168, 768, %s170, %s157
        $region28: #{tpu_custom_call.1} parent=23 // pred_fallthru
          _
      $region24: #{tpu_custom_call.1} parent=5 // pred_fallthru
        _
      %p173 = scmp.le.s32.totalorder 1, %s16
      %p174 = scmp.lt.s32.totalorder %s16, 3
      %p175 = pnand %p173, %p174
      %p176 = pneg %p175
      // Predicated region
      $region29: #{tpu_custom_call.1} parent=5 // pred_check
        _
      $region30: #{tpu_custom_call.1} parent=5 // pred_check_branch
        %178 = sbr.rel (%p175) target = $region32
      $region31: #{tpu_custom_call.1} parent=5 // pred_region
        %s179 = ssub.s32 %s16, 1
        %s180 = sand.u32 %s29, 1
        %s181 = scalar_lea.sflag [#allocation3], %s180
        %s182 = sand.u32 %s29, 1
        %s183 = smul.addr %s182, 48
        %s184 = scalar_lea.vmem [#allocation2], %s183
        // Predicated region
        $region33: #{tpu_custom_call.1} parent=31 // pred_check
          %p185 = pneg %p42
        $region34: #{tpu_custom_call.1} parent=31 // pred_check_branch
          %187 = sbr.rel (%p185) target = $region36
        $region35: #{tpu_custom_call.1} parent=31 // pred_region
          %189 = dma.done %s181, 768
        $region36: #{tpu_custom_call.1} parent=31 // pred_fallthru
          _
        // Predicated region
        $region37: #{tpu_custom_call.1} parent=31 // pred_check
          %p190 = pneg %p63
        $region38: #{tpu_custom_call.1} parent=31 // pred_check_branch
          %192 = sbr.rel (%p190) target = $region40
        $region39: #{tpu_custom_call.1} parent=31 // pred_region
          %194 = dma.done [#allocation6], 96
        $region40: #{tpu_custom_call.1} parent=31 // pred_fallthru
          _
        // Predicated region
        $region41: #{tpu_custom_call.1} parent=31 // pred_check
          %p195 = pneg %p84
        $region42: #{tpu_custom_call.1} parent=31 // pred_check_branch
          %197 = sbr.rel (%p195) target = $region44
        $region43: #{tpu_custom_call.1} parent=31 // pred_region
          %199 = dma.done [#allocation6], 96
        $region44: #{tpu_custom_call.1} parent=31 // pred_fallthru
          _
        %s200 = sand.u32 %s29, 1
        %s201 = scalar_lea.sflag [#allocation3], %s200
        %s202 = sand.u32 %s29, 1
        %s203 = smul.addr %s202, 48
        %s204 = scalar_lea.vmem [#allocation2], %s203
        %p205 = pneg %p42
        %p206 = pneg %p39
        %p207 = pneg %p63
        %p208 = pneg %p60
        %p209 = pneg %p84
        %p210 = pneg %p81
        %p211 = pneg %p110
        %p212 = pneg %p107
        %s213 = sand.u32 %s97, 1
        %s214 = scalar_lea.sflag [#allocation4], %s213
        %s215 = sand.u32 %s97, 1
        %s216 = smul.addr %s215, 48
        %s217 = scalar_lea.vmem [#allocation8], %s216
        %v218 = vld [vmem:[%s184] sm:$0xff]
        %v219 = vld [vmem:[%s184 + $0x8] sm:$0xff]
        %v220 = vld [vmem:[%s184 + $0x10] sm:$0xff]
        %v221 = vld [vmem:[%s184 + $0x18] sm:$0xff]
        %v222 = vld [vmem:[%s184 + $0x20] sm:$0xff]
        %v223 = vld [vmem:[%s184 + $0x28] sm:$0xff]
        %v224 = vld [vmem:[#allocation5] sm:$0x3f]
        %v225 = vld [vmem:[#allocation7] sm:$0x3f]
        %v226 = vadd.f32 %v218, %v219
        %v227 = vadd.f32 %v226, %v220
        %v228 = vadd.f32 %v227, %v221
        %v229 = vadd.f32 %v228, %v222
        %v230 = vadd.f32 %v229, %v223
        %231 = vadd.xlane.f32.xlu0 %v230
        %v232 = vpop.xlane.xlu0 %231
        %v233 = vmul.f32 %v232, 0.0013020834
        %v234 = vsub.f32 %v218, %v233
        %v235 = vsub.f32 %v219, %v233
        %v236 = vsub.f32 %v220, %v233
        %v237 = vsub.f32 %v221, %v233
        %v238 = vsub.f32 %v222, %v233
        %v239 = vsub.f32 %v223, %v233
        %v240 = vmul.f32 %v234, %v234
        %v241 = vmul.f32 %v235, %v235
        %v242 = vmul.f32 %v236, %v236
        %v243 = vmul.f32 %v237, %v237
        %v244 = vmul.f32 %v238, %v238
        %v245 = vmul.f32 %v239, %v239
        %v246 = vadd.f32 %v240, %v241
        %v247 = vadd.f32 %v246, %v242
        %v248 = vadd.f32 %v247, %v243
        %v249 = vadd.f32 %v248, %v244
        %v250 = vadd.f32 %v249, %v245
        %251 = vadd.xlane.f32.xlu0 %v250
        %v252 = vpop.xlane.xlu0 %251
        %v253 = vmul.f32 %v252, 0.0013020834
        %v254 = vadd.f32 %v253, 1e-12
        %v255 = vrsqrt.pop %v254
        %v256 = vmul.f32 %v255, %v254
        %v257 = vmul.f32 %v256, %v255
        %v258 = vmul.f32 0.5, %v257
        %v259 = vsub.f32 1.5, %v258
        %v260 = vmul.f32 %v255, %v259
        %vm261 = vweird.f32 %v254
        %vm262 = vweird.f32 %v255
        %vm263 = vmor %vm261, %vm262
        %v264 = vsel %vm263, %v255, %v260
        %v265 = vmul.f32 %v234, %v264
        %v266 = vmul.f32 %v235, %v264
        %v267 = vmul.f32 %v236, %v264
        %v268 = vmul.f32 %v237, %v264
        %v269 = vmul.f32 %v238, %v264
        %v270 = vmul.f32 %v239, %v264
        %v272 = vperm.slane %v224, 0
        %v273 = vperm.slane %v224, 1
        %v274 = vperm.slane %v224, 2
        %v275 = vperm.slane %v224, 3
        %v276 = vperm.slane %v224, 4
        %v277 = vperm.slane %v224, 5
        %v284 = vmul.f32 %v272, %v265
        %v285 = vmul.f32 %v273, %v266
        %v286 = vmul.f32 %v274, %v267
        %v287 = vmul.f32 %v275, %v268
        %v288 = vmul.f32 %v276, %v269
        %v289 = vmul.f32 %v277, %v270
        %v291 = vperm.slane %v225, 0
        %v292 = vperm.slane %v225, 1
        %v293 = vperm.slane %v225, 2
        %v294 = vperm.slane %v225, 3
        %v295 = vperm.slane %v225, 4
        %v296 = vperm.slane %v225, 5
        %v303 = vadd.f32 %v284, %v291
        %v304 = vadd.f32 %v285, %v292
        %v305 = vadd.f32 %v286, %v293
        %v306 = vadd.f32 %v287, %v294
        %v307 = vadd.f32 %v288, %v295
        %v308 = vadd.f32 %v289, %v296
        %309 = vst [vmem:[%s217] sm:$0xff] %v303
        %310 = vst [vmem:[%s217 + $0x8] sm:$0xff] %v304
        %311 = vst [vmem:[%s217 + $0x10] sm:$0xff] %v305
        %312 = vst [vmem:[%s217 + $0x18] sm:$0xff] %v306
        %313 = vst [vmem:[%s217 + $0x20] sm:$0xff] %v307
        %314 = vst [vmem:[%s217 + $0x28] sm:$0xff] %v308
        %s315 = sand.u32 %s97, 1
        %s316 = scalar_lea.sflag [#allocation4], %s315
        %s317 = sand.u32 %s97, 1
        %s318 = smul.addr %s317, 48
        %s319 = scalar_lea.vmem [#allocation8], %s318
        // Predicated region
        $region45: #{tpu_custom_call.1} parent=31 // pred_check
          %p320 = pneg %p107
        $region46: #{tpu_custom_call.1} parent=31 // pred_check_branch
          %322 = sbr.rel (%p320) target = $region48
        $region47: #{tpu_custom_call.1} parent=31 // pred_region
          %324 = vsyncadd %s316, 0
          %s325 = smul.addr %s21, 6
          %s326 = smul.addr %s325, 8
          %s327 = scalar_lea.hbm %s3, %s326
          %s329 = sshll.u32 %s319, 4
          %s330 = int_to_ptr.vmem [resolvable:$true] %s329
          %s331 = sshll.u32 %s327, 4
          %s332 = int_to_ptr.hbm [resolvable:$true] %s331
          %334 = dma.vmem_to_hbm [thread:$0]  %s330, 768, %s332, %s316
        $region48: #{tpu_custom_call.1} parent=31 // pred_fallthru
          _
      $region32: #{tpu_custom_call.1} parent=5 // pred_fallthru
        _
      %p335 = scmp.le.s32.totalorder 2, %s16
      // Predicated region
      $region49: #{tpu_custom_call.1} parent=5 // pred_check
        %p336 = pneg %p335
      $region50: #{tpu_custom_call.1} parent=5 // pred_check_branch
        %338 = sbr.rel (%p336) target = $region52
      $region51: #{tpu_custom_call.1} parent=5 // pred_region
        %s339 = ssub.s32 %s16, 2
        // Predicated region
        $region53: #{tpu_custom_call.1} parent=51 // pred_check
          %p340 = pneg %p113
        $region54: #{tpu_custom_call.1} parent=51 // pred_check_branch
          %342 = sbr.rel (%p340) target = $region56
        $region55: #{tpu_custom_call.1} parent=51 // pred_region
          %s343 = sand.u32 %s98, 1
          %s344 = scalar_lea.sflag [#allocation4], %s343
          %s345 = sand.u32 %s98, 1
          %s346 = smul.addr %s345, 48
          %s347 = scalar_lea.vmem [#allocation8], %s346
          %349 = dma.done %s344, 768
        $region56: #{tpu_custom_call.1} parent=51 // pred_fallthru
          _
      $region52: #{tpu_custom_call.1} parent=5 // pred_fallthru
        _
    $region6: #{tpu_custom_call.1} parent=1 // loop_footer
      %s20 = sadd.s32 1, %s16
    $region7: #{tpu_custom_call.1} parent=1 // loop_footer_branch
      %15 = sbr.rel target = $region3
    $region8: #{tpu_custom_call.1} parent=1 // loop_exit
      _
    %350 = vsyncpa [#allocation3], 1
    %s351 = scalar_lea.sflag [#allocation3], 1
    %352 = vsyncpa %s351, 1
    %353 = vsyncpa [#allocation6], 1
    %354 = vsyncpa [#allocation4], 1
    %s355 = scalar_lea.sflag [#allocation4], 1
    %356 = vsyncpa %s355, 1

</llo_original>
